<compile_context>
chip_gen: v5e
topology: v5e:2x2
jax: 0.10.0
libtpu: 0.0.40
codegen_flags: <defaults>
</compile_context>

<pallas_src>
import jax
import jax.numpy as jnp
from jax.experimental import pallas as pl
from jax.experimental.pallas import tpu as pltpu


def attention_fusion_kernel(x_ref, wt_ref, b_ref, o_ref):
    # x_ref: (Bt, N, H) tokens for this batch tile (native dtype)
    x = x_ref[...]
    n_tokens = x.shape[1]

    # context = mean over tokens (torch dim=1); small result kept in f32
    ctx = jnp.mean(x, axis=1).astype(jnp.float32)                 # (Bt, H)

    # query = context @ W^T + b. W is pre-transposed wrapper-side, so this is a
    # plain (Bt,H)@(H,H) MXU matmul with no in-kernel transpose.
    query = jnp.dot(ctx.astype(wt_ref.dtype), wt_ref[...],
                    preferred_element_type=jnp.float32)           # (Bt, H) f32
    query = query + b_ref[...]                                    # bias is f32 (1, H)

    # scores[b, n] = <x[b, n, :], query[b, :]>  — VPU multiply + lane reduce,
    # no query.T and no (N,1)-shaped MXU result.
    qb = query.astype(x.dtype)                                    # (Bt, H)
    scores = jnp.sum(x * qb[:, None, :], axis=-1).astype(jnp.float32)  # (Bt, N)

    # softmax over the token dimension (torch dim=1), max-subtracted, f32
    m = jnp.max(scores, axis=-1, keepdims=True)
    e = jnp.exp(scores - m)
    weights = e / jnp.sum(e, axis=-1, keepdims=True)              # (Bt, N) f32

    # fused = sum_n weights * tokens; residual = context
    # TODO(synk): for large N, route this through the MXU as weights^T @ x instead
    # of a sublane-axis reduction.
    fused = jnp.sum(weights[:, :, None].astype(x.dtype) * x,
                    axis=1).astype(jnp.float32)                   # (Bt, H)

    o_ref[...] = (fused + ctx).astype(o_ref.dtype)                # (Bt, H)


def attention_fusion(cls_tokens, w, b, *, block_b=128):
    """cls_tokens: (B, N, H); w: (H, H); b: (H,). Returns (B, H)."""
    B, N, H = cls_tokens.shape

    # Batch tile: whole batch in one step when small, else 128-row tiles
    # (multiple of 8 → sublane-aligned output blocks; grid >= 2 for large B so
    # both v7x TensorCores get work via the parallel batch axis).
    Bt = B if B <= block_b else block_b
    Bp = ((B + Bt - 1) // Bt) * Bt
    if Bp != B:
        cls_tokens = jnp.pad(cls_tokens, ((0, Bp - B), (0, 0), (0, 0)))

    # One-time transposes / reshapes outside the kernel (no per-step XLU work).
    w_t = jnp.transpose(w)                       # (H, H): query = ctx @ w_t
    b2d = b.reshape(1, H).astype(jnp.float32)    # (1, H) bias, f32 accumulation

    out = pl.pallas_call(
        attention_fusion_kernel,
        out_shape=jax.ShapeDtypeStruct((Bp, H), cls_tokens.dtype),
        grid_spec=pltpu.PrefetchScalarGridSpec(
            num_scalar_prefetch=0,
            grid=(Bp // Bt,),
            in_specs=[
                pl.BlockSpec((Bt, N, H), lambda i: (i, 0, 0)),  # batch-tiled tokens
                pl.BlockSpec((H, H), lambda i: (0, 0)),         # resident W^T
                pl.BlockSpec((1, H), lambda i: (0, 0)),         # resident bias
            ],
            out_specs=pl.BlockSpec((Bt, H), lambda i: (i, 0)),
        ),
        compiler_params=pltpu.CompilerParams(
            dimension_semantics=("parallel",),
            vmem_limit_bytes=48 * 1024 * 1024,   # fits v7x's 64 MiB VMEM per TC
        ),
    )(cls_tokens, w_t, b2d)

    return out[:B]


def attention_fusion_ref(cls_tokens, w, b):
    """Pure-JAX reference mirroring the PyTorch forward."""
    context = jnp.mean(cls_tokens, axis=1)                        # (B, H)
    query = (context @ w.T + b)[:, :, None]                       # (B, H, 1)
    scores = jnp.matmul(cls_tokens, query)                        # (B, N, 1)
    weights = jax.nn.softmax(scores, axis=1)                      # (B, N, 1)
    fused = jnp.sum(weights * cls_tokens, axis=1)                 # (B, H)
    residual = jnp.mean(cls_tokens, axis=1)                       # (B, H)
    return fused + residual


if __name__ == "__main__":
    B, N, H = 2, 8, 32   # batch, num cls tokens, hidden_dim

    key = jax.random.PRNGKey(0)
    k_x, k_w, k_b = jax.random.split(key, 3)

    cls_tokens = jax.random.normal(k_x, (B, N, H), dtype=jnp.float32)
    # Deterministic nn.Linear-style init (uniform in +-1/sqrt(H))
    bound = 1.0 / (H ** 0.5)
    w = jax.random.uniform(k_w, (H, H), jnp.float32, -bound, bound)
    b = jax.random.uniform(k_b, (H,), jnp.float32, -bound, bound)

    out = attention_fusion(cls_tokens, w, b)
    out = jax.block_until_ready(out)

    ref = attention_fusion_ref(cls_tokens, w, b)
    assert out.shape == (B, H)
    assert jnp.allclose(out, ref, atol=1e-5, rtol=1e-5), "mismatch vs reference"

    print("KERNEL_OK")
</pallas_src>

<mosaic_0001>
module attributes {stable_mosaic.version = 11 : i64} {
  func.func @attention_fusion_kernel(%arg0: i32, %arg1: memref<2x8x32xf32, #tpu.memory_space<vmem>>, %arg2: memref<32x32xf32, #tpu.memory_space<vmem>>, %arg3: memref<1x32xf32, #tpu.memory_space<vmem>>, %arg4: memref<2x32xf32, #tpu.memory_space<vmem>>) attributes {dimension_semantics = [#tpu.dimension_semantics<parallel>], iteration_bounds = array<i64: 1>, scalar_prefetch = 0 : i64, scratch_operands = 0 : i64, tpu.core_type = #tpu.core_type<tc>, window_params = [{transform_indices = @transform_0, window_bounds = array<i64: 2, 8, 32>}, {pipeline_mode = #tpu.pipeline_mode<synchronous>, transform_indices = @transform_1, window_bounds = array<i64: 32, 32>}, {pipeline_mode = #tpu.pipeline_mode<synchronous>, transform_indices = @transform_2, window_bounds = array<i64: 1, 32>}, {transform_indices = @transform_3, window_bounds = array<i64: 2, 32>}]} {
    %c0 = arith.constant 0 : index
    %c0_0 = arith.constant 0 : index
    %c0_1 = arith.constant 0 : index
    %0 = vector.load %arg1[%c0, %c0_0, %c0_1] : memref<2x8x32xf32, #tpu.memory_space<vmem>>, vector<2x8x32xf32>
    %cst = arith.constant dense<0.000000e+00> : vector<2x32xf32>
    %1 = vector.multi_reduction <add>, %0, %cst [1] : vector<2x8x32xf32> to vector<2x32xf32>
    %cst_2 = arith.constant 8.000000e+00 : f32
    %2 = vector.broadcast %cst_2 : f32 to vector<2x32xf32>
    %3 = arith.divf %1, %2 : vector<2x32xf32>
    %c0_3 = arith.constant 0 : index
    %c0_4 = arith.constant 0 : index
    %4 = vector.load %arg2[%c0_3, %c0_4] : memref<32x32xf32, #tpu.memory_space<vmem>>, vector<32x32xf32>
    %cst_5 = arith.constant dense<0.000000e+00> : vector<2x32xf32>
    %5 = tpu.matmul %3, %4, %cst_5 {dimension_numbers = #tpu.dot_dimension_numbers<[1], [0], [0], [1], [0, 0, 1, 1], [], []>} : vector<2x32xf32>, vector<32x32xf32>, vector<2x32xf32> -> vector<2x32xf32>
    %c0_6 = arith.constant 0 : index
    %c0_7 = arith.constant 0 : index
    %6 = vector.load %arg3[%c0_6, %c0_7] : memref<1x32xf32, #tpu.memory_space<vmem>>, vector<1x32xf32>
    %7 = vector.broadcast %6 : vector<1x32xf32> to vector<2x32xf32>
    %8 = arith.addf %5, %7 : vector<2x32xf32>
    %9 = vector.shape_cast %8 : vector<2x32xf32> to vector<2x1x32xf32>
    %10 = vector.broadcast %9 : vector<2x1x32xf32> to vector<2x8x32xf32>
    %11 = arith.mulf %0, %10 : vector<2x8x32xf32>
    %cst_8 = arith.constant dense<0.000000e+00> : vector<2x8xf32>
    %12 = vector.multi_reduction <add>, %11, %cst_8 [2] : vector<2x8x32xf32> to vector<2x8xf32>
    %cst_9 = arith.constant dense<0xFF800000> : vector<2xf32>
    %13 = vector.multi_reduction <maximumf>, %12, %cst_9 [1] : vector<2x8xf32> to vector<2xf32>
    %14 = vector.shape_cast %13 : vector<2xf32> to vector<2x1xf32>
    %15 = vector.broadcast %14 : vector<2x1xf32> to vector<2x8xf32>
    %16 = arith.subf %12, %15 : vector<2x8xf32>
    %17 = math.exp %16 : vector<2x8xf32>
    %cst_10 = arith.constant dense<0.000000e+00> : vector<2xf32>
    %18 = vector.multi_reduction <add>, %17, %cst_10 [1] : vector<2x8xf32> to vector<2xf32>
    %19 = vector.shape_cast %18 : vector<2xf32> to vector<2x1xf32>
    %20 = vector.broadcast %19 : vector<2x1xf32> to vector<2x8xf32>
    %21 = arith.divf %17, %20 : vector<2x8xf32>
    %22 = vector.shape_cast %21 : vector<2x8xf32> to vector<2x8x1xf32>
    %23 = vector.broadcast %22 : vector<2x8x1xf32> to vector<2x8x32xf32>
    %24 = arith.mulf %23, %0 : vector<2x8x32xf32>
    %cst_11 = arith.constant dense<0.000000e+00> : vector<2x32xf32>
    %25 = vector.multi_reduction <add>, %24, %cst_11 [1] : vector<2x8x32xf32> to vector<2x32xf32>
    %26 = arith.addf %25, %3 : vector<2x32xf32>
    %c0_12 = arith.constant 0 : index
    %c0_13 = arith.constant 0 : index
    %27 = vector.load %arg4[%c0_12, %c0_13] : memref<2x32xf32, #tpu.memory_space<vmem>>, vector<2x32xf32>
    tpu.vector_store %arg4[%c0_12, %c0_13], %26 {strides = array<i32>} : memref<2x32xf32, #tpu.memory_space<vmem>>, vector<2x32xf32>,
    return
  }
  func.func @transform_0(%arg0: i32) -> (i32, i32, i32) {
    %c0_i32 = arith.constant 0 : i32
    %c0_i32_0 = arith.constant 0 : i32
    %c0_i32_1 = arith.constant 0 : i32
    return %arg0, %c0_i32, %c0_i32_0 : i32, i32, i32
  }
  func.func @transform_1(%arg0: i32) -> (i32, i32) {
    %c0_i32 = arith.constant 0 : i32
    %c0_i32_0 = arith.constant 0 : i32
    %c0_i32_1 = arith.constant 0 : i32
    return %c0_i32, %c0_i32_0 : i32, i32
  }
  func.func @transform_2(%arg0: i32) -> (i32, i32) {
    %c0_i32 = arith.constant 0 : i32
    %c0_i32_0 = arith.constant 0 : i32
    %c0_i32_1 = arith.constant 0 : i32
    return %c0_i32, %c0_i32_0 : i32, i32
  }
  func.func @transform_3(%arg0: i32) -> (i32, i32) {
    %c0_i32 = arith.constant 0 : i32
    %c0_i32_0 = arith.constant 0 : i32
    return %arg0, %c0_i32 : i32, i32
  }
}

</mosaic_0001>

<llo_original>
// kernel: tpu_custom_call.1
$region0: #{tpu_custom_call.1}
  #allocation0 [shape = 'u32[]', space=smem, size = 0x4, offset = 0x4, fixed_abs, tag = 'smem constant byte address 0x4 - core index']
  #allocation1 [shape = 'u32[72,128]{1,0:T(1,128)}', space=vmem, size = 0x9000, scoped, tag = 'internal scratch']
  %s0 = inlined_call_operand.hbm [shape: f32[2,8,32], index: 0, kind: input, shape index: {}]
  %s1 = inlined_call_operand.hbm [shape: f32[32,32], index: 1, kind: input, shape index: {}]
  %s2 = inlined_call_operand.vmem [shape: f32[1,32], index: 2, kind: input, shape index: {}]
  %s3 = inlined_call_operand.hbm [shape: f32[2,32], index: 3, kind: output, shape index: {}]
  %s4 = sld [smem:[#allocation0]]
  $region30: #{tpu_custom_call.1} parent=0
    _
  %s6 = ssub.s32 1, %s4
  %s7 = scalar_select 0, %s6, %s4
  $region1: #{tpu_custom_call.1} parent=0
    #allocation2 [shape = 'u8[8192]{0}', space=vmem, size = 0x2000, scoped, tag = 'input window, operand 0, single buffered']
    #allocation3 [shape = 's32[1]{0}', space=sflag, size = 0x4, scoped, tag = 'scoped memory for tpu_custom_call.1']
    #allocation4 [shape = 's32[1]{0}', space=sflag, size = 0x4, scoped, tag = 'scoped memory for tpu_custom_call.1']
    #allocation5 [shape = 'u8[16384]{0}', space=vmem, size = 0x4000, scoped, tag = 'input window, operand 1, single buffered']
    #allocation6 [shape = 's32[1]{0}', space=sflag, size = 0x4, scoped, tag = 'scoped memory for tpu_custom_call.1']
    #allocation7 [shape = 'u8[1024]{0}', space=vmem, size = 0x400, scoped, tag = 'output window, operand 0, single buffered']
    %8 = vsyncpa [#allocation3], 0
    %9 = vsyncpa [#allocation6], 0
    %10 = vsyncpa [#allocation4], 0
    // Predicated region
    $region2: #{tpu_custom_call.1} parent=1 // pred_check
      _
    $region3: #{tpu_custom_call.1} parent=1 // pred_check_branch
      %12 = sbr.rel (0) target = $region5
    $region4: #{tpu_custom_call.1} parent=1 // pred_region
      %14 = vsyncadd [#allocation3], 0
      %s15 = sshll.u32 %s0, 4
      %s16 = int_to_ptr.hbm [resolvable:$true] %s15
      %s17 = sshll.u32 [#allocation2], 4
      %s18 = int_to_ptr.vmem [resolvable:$true] %s17
      %23 = dma.hbm_to_vmem [thread:$0]  %s16, 256, %s18, [#allocation3], 128, 128, 8
    $region5: #{tpu_custom_call.1} parent=1 // pred_fallthru
      _
    // Predicated region
    $region6: #{tpu_custom_call.1} parent=1 // pred_check
      _
    $region7: #{tpu_custom_call.1} parent=1 // pred_check_branch
      %25 = sbr.rel (0) target = $region9
    $region8: #{tpu_custom_call.1} parent=1 // pred_region
      %27 = vsyncadd [#allocation6], 0
      %s28 = sshll.u32 %s1, 4
      %s29 = int_to_ptr.hbm [resolvable:$true] %s28
      %s30 = sshll.u32 [#allocation5], 4
      %s31 = int_to_ptr.vmem [resolvable:$true] %s30
      %36 = dma.hbm_to_vmem [thread:$0]  %s29, 512, %s31, [#allocation6], 128, 128, 8
    $region9: #{tpu_custom_call.1} parent=1 // pred_fallthru
      _
    // Predicated region
    $region10: #{tpu_custom_call.1} parent=1 // pred_check
      _
    $region11: #{tpu_custom_call.1} parent=1 // pred_check_branch
      %38 = sbr.rel (0) target = $region13
    $region12: #{tpu_custom_call.1} parent=1 // pred_region
      _
    $region13: #{tpu_custom_call.1} parent=1 // pred_fallthru
      _
    // Predicated region
    $region14: #{tpu_custom_call.1} parent=1 // pred_check
      _
    $region15: #{tpu_custom_call.1} parent=1 // pred_check_branch
      %40 = sbr.rel (0) target = $region17
    $region16: #{tpu_custom_call.1} parent=1 // pred_region
      %42 = dma.done [#allocation3], 256
    $region17: #{tpu_custom_call.1} parent=1 // pred_fallthru
      _
    // Predicated region
    $region18: #{tpu_custom_call.1} parent=1 // pred_check
      _
    $region19: #{tpu_custom_call.1} parent=1 // pred_check_branch
      %44 = sbr.rel (0) target = $region21
    $region20: #{tpu_custom_call.1} parent=1 // pred_region
      %46 = dma.done [#allocation6], 512
    $region21: #{tpu_custom_call.1} parent=1 // pred_fallthru
      _
    %v47 = vld [vmem:[#allocation2] sm:$0xff]
    %v48 = vld [vmem:[#allocation2 + $0x8] sm:$0xff]
    %vm49 = vcmask 261120
    %v50 = vsel %vm49, %v47, 0.0
    %v51 = vrot.slane %v50, 4
    %v52 = vadd.f32 %v50, %v51
    %v53 = vrot.slane %v52, 2
    %v54 = vadd.f32 %v52, %v53
    %v55 = vrot.slane %v54, 1
    %v56 = vadd.f32 %v54, %v55
    %v57 = vsel %vm49, %v48, 0.0
    %v58 = vrot.slane %v57, 4
    %v59 = vadd.f32 %v57, %v58
    %v60 = vrot.slane %v59, 2
    %v61 = vadd.f32 %v59, %v60
    %v62 = vrot.slane %v61, 1
    %v63 = vadd.f32 %v61, %v62
    %v64 = vrcp.pop 8.0
    %v65 = vmul.f32 8.0, %v64
    %v66 = vsub.f32 1.0, %v65
    %v67 = vmul.f32 %v64, %v66
    %v68 = vadd.f32 %v64, %v67
    %vm69 = vweird.f32 %v64
    %v70 = vsel %vm69, %v64, %v68
    %v71 = vmul.f32 %v56, %v70
    %v72 = vmul.f32 %v63, %v70
    %v73 = vld [vmem:[#allocation5] sm:$0xff]
    %v74 = vld [vmem:[#allocation5 + $0x8] sm:$0xff]
    %v75 = vld [vmem:[#allocation5 + $0x10] sm:$0xff]
    %v76 = vld [vmem:[#allocation5 + $0x18] sm:$0xff]
    %v77 = vld [vmem:[%s2] sm:$0x1]
    %v79 = vperm.slane %v77, 0
    %vm83 = vcmask 1041409
    %v84 = vsel %vm83, %v72, %v71
    %v85 = vsel %vm49, %v84, 0
    %87 = vmatpush.msra.mxu0 0.0
    %88 = vmatpush.msra.mxu0 0.0
    %89 = vmatpush.msra.mxu0 0.0
    %90 = vmatpush.msra.mxu0 0.0
    %91 = vmatpush.msra.mxu0 0.0
    %92 = vmatpush.msra.mxu0 0.0
    %93 = vmatpush.msra.mxu0 0.0
    %94 = vmatpush.msra.mxu0 0.0
    %95 = vmatpush.msra.mxu0 0.0
    %96 = vmatpush.msra.mxu0 0.0
    %97 = vmatpush.msra.mxu0 0.0
    %98 = vmatpush.msra.mxu0 0.0
    %99 = vmatpush.msra.mxu0 %v76
    %100 = vmatpush.msra.mxu0 %v75
    %101 = vmatpush.msra.mxu0 %v74
    %102 = vmatpush.msra.mxu0 %v73
    %103 = vmatmul.f32.gmra.mxu0 %v85
    %v104 = vpop.f32.mrf.mxu0
    %v105 = vadd.f32 %v79, %v104
    %106 = vdwg.mxu0
    %v108 = vrot.slane %v105, 1
    %v109 = vperm.slane %v105, 0
    %v110 = vperm.slane %v108, 0
    %v113 = vmul.f32 %v47, %v109
    %v114 = vmul.f32 %v48, %v110
    %v115 = vsel %vm49, %v113, 0.0
    %116 = vadd.xlane.f32.xlu0 %v115
    %v117 = vpop.xlane.xlu0 %116
    %v118 = vsel %vm49, %v114, 0.0
    %119 = vadd.xlane.f32.xlu0 %v118
    %v120 = vpop.xlane.xlu0 %119
    %v123 = vlaneseq
    %v124 = vand.u32 %v123, 127
    %v125 = vperm.slane %v117, %v124
    %v126 = vperm.slane %v120, %v124
    %v127 = vsel %vm83, %v126, %v125
    %vm129 = vcmask 58368
    %v130 = vsel %vm129, %v127, -inf
    %131 = vmax.xlane.f32.xlu0 %v130
    %v132 = vpop.xlane.xlu0 %131
    %v134 = vperm.slane %v132, 0
    %v135 = vperm.slane %v132, 1
    %v138 = vsub.f32 %v117, %v134
    %v139 = vsub.f32 %v120, %v135
    %v140 = vmul.f32 %v138, 1.442695
    %v141 = vpow.pop %v140
    %v142 = vmul.f32 %v139, 1.442695
    %v143 = vpow.pop %v142
    %146 = vset.pattern.permute.xlu0 0
    %147 = vperm.xlu0 %146, %v141
    %v148 = vpop.permute.xlu0 %147
    %149 = vset.pattern.permute.xlu0 0
    %150 = vperm.xlu0 %149, %v143
    %v151 = vpop.permute.xlu0 %150
    %v152 = vperm.slane %v148, %v124
    %v153 = vperm.slane %v151, %v124
    %v154 = vsel %vm83, %v153, %v152
    %v156 = vsel %vm129, %v154, 0.0
    %157 = vadd.xlane.f32.xlu0 %v156
    %v158 = vpop.xlane.xlu0 %157
    %v160 = vperm.slane %v158, 0
    %v161 = vperm.slane %v158, 1
    %v164 = vrcp.pop %v160
    %v165 = vmul.f32 %v160, %v164
    %v166 = vsub.f32 1.0, %v165
    %v167 = vmul.f32 %v164, %v166
    %v168 = vadd.f32 %v164, %v167
    %vm169 = vweird.f32 %v160
    %vm170 = vweird.f32 %v164
    %vm171 = vmor %vm169, %vm170
    %v172 = vsel %vm171, %v164, %v168
    %v173 = vand.u32 2147483647, %v160
    %vm174 = vcmp.eq.f32.partialorder %v173, 8.507059e+37
    %v175 = vand.u32 %v160, 2147483648
    %v176 = vor.u32 1.1754944e-38, %v175
    %v177 = vsel %vm174, %v176, %v172
    %v178 = vmul.f32 %v141, %v177
    %v179 = vrcp.pop %v161
    %v180 = vmul.f32 %v161, %v179
    %v181 = vsub.f32 1.0, %v180
    %v182 = vmul.f32 %v179, %v181
    %v183 = vadd.f32 %v179, %v182
    %vm184 = vweird.f32 %v161
    %vm185 = vweird.f32 %v179
    %vm186 = vmor %vm184, %vm185
    %v187 = vsel %vm186, %v179, %v183
    %v188 = vand.u32 2147483647, %v161
    %vm189 = vcmp.eq.f32.partialorder %v188, 8.507059e+37
    %v190 = vand.u32 %v161, 2147483648
    %v191 = vor.u32 1.1754944e-38, %v190
    %v192 = vsel %vm189, %v191, %v187
    %v193 = vmul.f32 %v143, %v192
    %195 = vset.pattern.permute.xlu0 0
    %196 = vperm.xlu0 %195, %v178
    %v197 = vpop.permute.xlu0 %196
    %200 = vset.pattern.permute.xlu0 0
    %201 = vperm.xlu0 %200, %v193
    %v202 = vpop.permute.xlu0 %201
    %v204 = vmul.f32 %v197, %v47
    %v205 = vmul.f32 %v202, %v48
    %v206 = vsel %vm49, %v204, 0.0
    %v207 = vrot.slane %v206, 4
    %v208 = vadd.f32 %v206, %v207
    %v209 = vrot.slane %v208, 2
    %v210 = vadd.f32 %v208, %v209
    %v211 = vrot.slane %v210, 1
    %v212 = vadd.f32 %v210, %v211
    %v213 = vsel %vm49, %v205, 0.0
    %v214 = vrot.slane %v213, 4
    %v215 = vadd.f32 %v213, %v214
    %v216 = vrot.slane %v215, 2
    %v217 = vadd.f32 %v215, %v216
    %v218 = vrot.slane %v217, 1
    %v219 = vadd.f32 %v217, %v218
    %v220 = vadd.f32 %v212, %v71
    %v221 = vadd.f32 %v219, %v72
    %v224 = vsel %vm83, %v221, %v220
    %vm226 = vcmask 254976
    %227 = vst.msk [vmem:[#allocation7] sm:$0x3] %vm226, %v224
    // Predicated region
    $region22: #{tpu_custom_call.1} parent=1 // pred_check
      _
    $region23: #{tpu_custom_call.1} parent=1 // pred_check_branch
      %229 = sbr.rel (0) target = $region25
    $region24: #{tpu_custom_call.1} parent=1 // pred_region
      %231 = vsyncadd [#allocation4], 0
      %s233 = sshll.u32 [#allocation7], 4
      %s234 = int_to_ptr.vmem [resolvable:$true] %s233
      %s235 = sshll.u32 %s3, 4
      %s236 = int_to_ptr.hbm [resolvable:$true] %s235
      %238 = dma.vmem_to_hbm [thread:$0]  %s234, 32, %s236, [#allocation4]
    $region25: #{tpu_custom_call.1} parent=1 // pred_fallthru
      _
    // Predicated region
    $region26: #{tpu_custom_call.1} parent=1 // pred_check
      _
    $region27: #{tpu_custom_call.1} parent=1 // pred_check_branch
      %240 = sbr.rel (0) target = $region29
    $region28: #{tpu_custom_call.1} parent=1 // pred_region
      %242 = dma.done [#allocation4], 32
    $region29: #{tpu_custom_call.1} parent=1 // pred_fallthru
      _
    %243 = vsyncpa [#allocation3], 1
    %244 = vsyncpa [#allocation6], 1
    %245 = vsyncpa [#allocation4], 1

</llo_original>
